<compile_context>
chip_gen: v6e
topology: v6e:2x2x1
jax: 0.10.0
libtpu: 0.0.40
codegen_flags: <defaults>
</compile_context>

<pallas_src>
import functools

import jax
import jax.numpy as jnp
from jax import lax
from jax.lax import linalg as lax_linalg
from jax.experimental import pallas as pl
from jax.experimental.pallas import tpu as pltpu

_LANE = 128


def _round_up(n, m):
    return ((n + m - 1) // m) * m


def _pick_tile(n_pad, max_tile):
    """Largest multiple of 128 <= max_tile that divides n_pad (n_pad is a mult. of 128)."""
    t = (min(max_tile, n_pad) // _LANE) * _LANE
    while n_pad % t != 0:
        t -= _LANE
    return t


def _make_ki_kernel(tile, num_tiles, n_valid, n_pad):
    """RBF kernel tile on the lower triangle, with diagonal noise + pad-to-identity masking."""
    has_pad = n_valid != n_pad
    last = num_tiles - 1

    def kernel(ii_ref, jj_ref, a_ref, b_ref, params_ref, out_ref):
        s = pl.program_id(0)
        i = ii_ref[s]                         # tile-row index (i >= j)
        j = jj_ref[s]                         # tile-col index
        variance = params_ref[0]
        neg_half_inv_ls2 = params_ref[1]      # -0.5 / lengthscale^2
        sn2 = params_ref[2]                   # sigma^2

        r0 = pl.multiple_of(i * tile, _LANE)
        c0 = pl.multiple_of(j * tile, _LANE)
        a_blk = a_ref[pl.ds(r0, tile), :]     # (tile, d_pad)  [x_r, 1, |x_r|^2, 0...]
        b_blk = b_ref[pl.ds(c0, tile), :]     # (tile, d_pad)  [-2*x_c, |x_c|^2, 1, 0...]

        # One MXU contraction gives the whole squared-distance tile:
        #   d2[m, k] = |x_m|^2 + |x_k|^2 - 2 * x_m . x_k
        d2 = lax.dot_general(a_blk, b_blk, (((1,), (1,)), ((), ())),
                             preferred_element_type=jnp.float32)
        kv = variance * jnp.exp(jnp.maximum(d2, 0.0) * neg_half_inv_ls2)

        is_diag = i == j
        if has_pad:
            cold = jnp.logical_or(is_diag, i == last)
        else:
            cold = is_diag

        # Hot path: interior off-diagonal tile -> one lane-dense store, nothing else.
        @pl.when(jnp.logical_not(cold))
        def _():
            out_ref[...] = kv

        # Cold path: diagonal tiles (add sigma^2*I) and, when N is not tile-aligned,
        # the last tile row (mask padded rows/cols to the identity so the padded
        # matrix is block-diag([KI, I]) in its lower triangle).  Single store.
        @pl.when(cold)
        def _():
            r_loc = lax.broadcasted_iota(jnp.int32, (tile, tile), 0)
            c_loc = lax.broadcasted_iota(jnp.int32, (tile, tile), 1)
            # Global identity pattern restricted to this tile (zero unless i == j).
            eye = (r_loc == c_loc).astype(jnp.float32) * is_diag.astype(jnp.float32)
            val = kv + sn2 * eye
            if has_pad:
                valid = jnp.logical_and(r_loc < (n_valid - i * tile),
                                        c_loc < (n_valid - j * tile))
                val = jnp.where(valid, val, eye)
            out_ref[...] = val

    return kernel


def compute_ki_lower(x, variance, lengthscale, sigma, *, max_tile=512):
    """Lower triangle of KI_pad = blockdiag(K(x,x) + sigma^2*I, I), padded to n_pad.

    Only lower-triangular tiles (tile_row >= tile_col) are written; the upper triangle
    of the returned (n_pad, n_pad) array is UNINITIALIZED and must not be read.  The
    downstream Cholesky (symmetrize_input=False), cho_solve((L, True), .) and
    logdet-from-diag(L) only touch the lower triangle / the factor L.
    """
    n, d = x.shape
    x = x.astype(jnp.float32)
    n_pad = _round_up(max(n, 1), _LANE)
    tile = _pick_tile(n_pad, max_tile)
    num_tiles = n_pad // tile
    d_pad = _round_up(d + 2, _LANE)

    sq = jnp.sum(x * x, axis=1)

    # Augmented point matrices so a single MXU contraction yields squared distances.
    a_aug = jnp.zeros((n_pad, d_pad), jnp.float32)
    a_aug = a_aug.at[:n, :d].set(x)
    a_aug = a_aug.at[:, d].set(1.0)
    a_aug = a_aug.at[:n, d + 1].set(sq)

    b_aug = jnp.zeros((n_pad, d_pad), jnp.float32)
    b_aug = b_aug.at[:n, :d].set(-2.0 * x)
    b_aug = b_aug.at[:n, d].set(sq)
    b_aug = b_aug.at[:, d + 1].set(1.0)

    # Hyperparameters as SMEM scalars (traceable under jit, no recompile per value).
    params = jnp.stack([
        jnp.asarray(variance, dtype=jnp.float32),
        -0.5 / jnp.square(jnp.asarray(lengthscale, dtype=jnp.float32)),
        jnp.square(jnp.asarray(sigma, dtype=jnp.float32)),
    ])

    # 1-D grid over the lower-triangular tile pairs.
    pairs = [(i, j) for i in range(num_tiles) for j in range(i + 1)]
    ii = jnp.asarray([p[0] for p in pairs], dtype=jnp.int32)
    jj = jnp.asarray([p[1] for p in pairs], dtype=jnp.int32)
    num_steps = len(pairs)

    kernel = _make_ki_kernel(tile, num_tiles, n, n_pad)
    # tile<=512 comfortably fits the default scoped budget on every generation; larger
    # tiles (opt-in) need more headroom for the matmul / masking intermediates.
    vmem_limit = (32 if tile <= 512 else 56) * 1024 * 1024

    ki = pl.pallas_call(
        kernel,
        out_shape=jax.ShapeDtypeStruct((n_pad, n_pad), jnp.float32),
        grid_spec=pltpu.PrefetchScalarGridSpec(
            num_scalar_prefetch=2,
            grid=(num_steps,),
            in_specs=[
                # A and B stay resident in VMEM (constant block index -> one DMA total).
                pl.BlockSpec((n_pad, d_pad), lambda s, it, jt: (0, 0)),
                pl.BlockSpec((n_pad, d_pad), lambda s, it, jt: (0, 0)),
                pl.BlockSpec(memory_space=pltpu.MemorySpace.SMEM),
            ],
            out_specs=pl.BlockSpec((tile, tile), lambda s, it, jt: (it[s], jt[s])),
        ),
        compiler_params=pltpu.CompilerParams(
            dimension_semantics=("parallel",),
            vmem_limit_bytes=vmem_limit,
        ),
    )(ii, jj, a_aug, b_aug, params)
    return ki, n_pad


def distgp_forward(x, y, variance, lengthscale, sigma, *, max_tile=512):
    """Negative log marginal likelihood, matching DistGP.forward (returns (1, 1))."""
    n = x.shape[0]
    y = y.astype(jnp.float32).reshape(n, 1)

    # Lower triangle of KI (padded to n_pad, pad block == I).
    KI, n_pad = compute_ki_lower(x, variance, lengthscale, sigma, max_tile=max_tile)
    y_pad = jnp.zeros((n_pad, 1), jnp.float32).at[:n, :].set(y)

    # TODO(synk): the Cholesky factorization / triangular solves are inherently sequential
    # and stay on the XLA linalg path.  symmetrize_input=False so only the (written) lower
    # triangle of KI is ever read; the pad block contributes identity (0 to logdet, 0 to
    # the quadratic form since y_pad is zero there).
    L = lax_linalg.cholesky(KI, symmetrize_input=False)
    z = jax.scipy.linalg.cho_solve((L, True), y_pad)        # solves KI z = y_pad
    yiKIy = y_pad.T @ z                                      # (1, 1)
    logdet = 2.0 * jnp.sum(jnp.log(jnp.diag(L)))

    log_marginal = -0.5 * yiKIy - 0.5 * logdet
    return -log_marginal


def _reference_forward(x, y, variance, lengthscale, sigma):
    """Pure-JAX reference following the torch code literally (explicit inverse + logdet)."""
    n = y.shape[0]
    x = x.astype(jnp.float32)
    y = y.astype(jnp.float32)
    sq = jnp.sum(x * x, axis=-1, keepdims=True)
    d2 = jnp.maximum(sq + sq.T - 2.0 * (x @ x.T), 0.0)
    K = variance * jnp.exp(-0.5 * d2 / (lengthscale * lengthscale))
    KI = K + (sigma * sigma) * jnp.eye(n, dtype=jnp.float32)
    iKI = jnp.linalg.solve(KI, jnp.eye(n, dtype=jnp.float32))
    yiKIy = y.T @ iKI @ y
    _, logdet = jnp.linalg.slogdet(KI)
    return 0.5 * yiKIy + 0.5 * logdet


if __name__ == "__main__":
    variance, lengthscale, sigma = 1.5, 0.7, 0.1
    key = jax.random.PRNGKey(0)
    k1, k2, k3, k4, k5, k6 = jax.random.split(key, 6)

    # Case 1: tiny shapes consistent with the module (N=8 points, input_dim=4).
    x_small = jax.random.normal(k1, (8, 4), dtype=jnp.float32)
    y_small = jax.random.normal(k2, (8, 1), dtype=jnp.float32)
    out_small = jax.block_until_ready(
        distgp_forward(x_small, y_small, variance, lengthscale, sigma))
    ref_small = _reference_forward(x_small, y_small, variance, lengthscale, sigma)
    assert out_small.shape == (1, 1), out_small.shape
    assert jnp.allclose(out_small, ref_small, rtol=1e-3, atol=1e-3), (out_small, ref_small)

    # Case 2: non-tile-aligned N with max_tile=128 -> 3x3 tile triangle (6 grid steps),
    # exercising the scalar-prefetched output index_map, the diagonal sigma^2 gate and
    # the last-tile-row pad-to-identity masking.
    x_big = jax.random.normal(k3, (300, 6), dtype=jnp.float32)
    y_big = jax.random.normal(k4, (300, 1), dtype=jnp.float32)
    out_big = jax.block_until_ready(
        distgp_forward(x_big, y_big, variance, lengthscale, sigma, max_tile=128))
    ref_big = _reference_forward(x_big, y_big, variance, lengthscale, sigma)
    assert out_big.shape == (1, 1), out_big.shape
    assert jnp.allclose(out_big, ref_big, rtol=2e-3, atol=2e-3), (out_big, ref_big)

    # Case 3: tile-aligned N (no pad masking branch), run under jit with *traced*
    # hyperparameters -- demonstrates that the SMEM-scalar hyperparameters do not force
    # a recompile per value.
    sigma3 = 0.5
    x_mid = jax.random.normal(k5, (256, 4), dtype=jnp.float32)
    y_mid = jax.random.normal(k6, (256, 1), dtype=jnp.float32)
    fwd = jax.jit(functools.partial(distgp_forward, max_tile=128))
    out_mid = jax.block_until_ready(
        fwd(x_mid, y_mid, jnp.float32(variance), jnp.float32(lengthscale),
            jnp.float32(sigma3)))
    ref_mid = _reference_forward(x_mid, y_mid, variance, lengthscale, sigma3)
    assert out_mid.shape == (1, 1), out_mid.shape
    assert jnp.allclose(out_mid, ref_mid, rtol=2e-3, atol=2e-3), (out_mid, ref_mid)

    print("KERNEL_OK")
</pallas_src>

<mosaic_0001>
module attributes {stable_mosaic.version = 11 : i64} {
  func.func @kernel(%arg0: i32, %arg1: memref<1xi32, #tpu.memory_space<smem>>, %arg2: memref<1xi32, #tpu.memory_space<smem>>, %arg3: memref<128x128xf32, #tpu.memory_space<vmem>>, %arg4: memref<128x128xf32, #tpu.memory_space<vmem>>, %arg5: memref<3xf32, #tpu.memory_space<smem>>, %arg6: memref<128x128xf32, #tpu.memory_space<vmem>>) attributes {dimension_semantics = [#tpu.dimension_semantics<parallel>], iteration_bounds = array<i64: 1>, scalar_prefetch = 2 : i64, scratch_operands = 0 : i64, tpu.core_type = #tpu.core_type<tc>, window_params = [{pipeline_mode = #tpu.pipeline_mode<synchronous>, transform_indices = @transform_0, window_bounds = array<i64: 128, 128>}, {pipeline_mode = #tpu.pipeline_mode<synchronous>, transform_indices = @transform_1, window_bounds = array<i64: 128, 128>}, {transform_indices = @transform_2, window_bounds = array<i64: 3>}, {transform_indices = @transform_3, window_bounds = array<i64: 128, 128>}]} {
    %0 = arith.index_cast %arg0 : i32 to index
    %1 = memref.load %arg1[%0] : memref<1xi32, #tpu.memory_space<smem>>
    %2 = arith.index_cast %arg0 : i32 to index
    %3 = memref.load %arg2[%2] : memref<1xi32, #tpu.memory_space<smem>>
    %c0 = arith.constant 0 : index
    %4 = memref.load %arg5[%c0] : memref<3xf32, #tpu.memory_space<smem>>
    %c1 = arith.constant 1 : index
    %5 = memref.load %arg5[%c1] : memref<3xf32, #tpu.memory_space<smem>>
    %c2 = arith.constant 2 : index
    %6 = memref.load %arg5[%c2] : memref<3xf32, #tpu.memory_space<smem>>
    %c128_i32 = arith.constant 128 : i32
    %7 = arith.muli %1, %c128_i32 : i32
    %8 = tpu.assume_multiple %7, 128 : i32
    %c128_i32_0 = arith.constant 128 : i32
    %9 = arith.muli %3, %c128_i32_0 : i32
    %10 = tpu.assume_multiple %9, 128 : i32
    %11 = arith.index_cast %8 : i32 to index
    %c0_1 = arith.constant 0 : index
    %12 = vector.load %arg3[%11, %c0_1] : memref<128x128xf32, #tpu.memory_space<vmem>>, vector<128x128xf32>
    %13 = arith.index_cast %10 : i32 to index
    %c0_2 = arith.constant 0 : index
    %14 = vector.load %arg4[%13, %c0_2] : memref<128x128xf32, #tpu.memory_space<vmem>>, vector<128x128xf32>
    %cst = arith.constant dense<0.000000e+00> : vector<128x128xf32>
    %15 = tpu.matmul %12, %14, %cst {dimension_numbers = #tpu.dot_dimension_numbers<[1], [1], [0], [0], [0, 0, 1, 0], [], []>} : vector<128x128xf32>, vector<128x128xf32>, vector<128x128xf32> -> vector<128x128xf32>
    %cst_3 = arith.constant 0.000000e+00 : f32
    %16 = vector.broadcast %cst_3 : f32 to vector<128x128xf32>
    %17 = arith.maximumf %15, %16 : vector<128x128xf32>
    %18 = vector.broadcast %5 : f32 to vector<128x128xf32>
    %19 = arith.mulf %17, %18 : vector<128x128xf32>
    %20 = math.exp %19 : vector<128x128xf32>
    %21 = vector.broadcast %4 : f32 to vector<128x128xf32>
    %22 = arith.mulf %21, %20 : vector<128x128xf32>
    %23 = arith.cmpi eq, %1, %3 : i32
    %c0_i32 = arith.constant 0 : i32
    %24 = arith.cmpi eq, %1, %c0_i32 : i32
    %25 = arith.ori %23, %24 : i1
    %true = arith.constant true
    %26 = arith.xori %25, %true : i1
    %27 = arith.extui %26 : i1 to i32
    %c0_i32_4 = arith.constant 0 : i32
    %28 = arith.cmpi ne, %27, %c0_i32_4 : i32
    scf.if %28 {
      %c0_6 = arith.constant 0 : index
      %c0_7 = arith.constant 0 : index
      %31 = vector.load %arg6[%c0_6, %c0_7] : memref<128x128xf32, #tpu.memory_space<vmem>>, vector<128x128xf32>
      tpu.vector_store %arg6[%c0_6, %c0_7], %22 {strides = array<i32>} : memref<128x128xf32, #tpu.memory_space<vmem>>, vector<128x128xf32>,
    } else {
    }
    %29 = arith.extui %25 : i1 to i32
    %c0_i32_5 = arith.constant 0 : i32
    %30 = arith.cmpi ne, %29, %c0_i32_5 : i32
    scf.if %30 {
      %31 = tpu.iota {dimensions = array<i32: 0>} : vector<128x128xi32>
      %32 = tpu.iota {dimensions = array<i32: 1>} : vector<128x128xi32>
      %33 = arith.cmpi eq, %31, %32 : vector<128x128xi32>
      %34 = arith.extui %33 : vector<128x128xi1> to vector<128x128xi32>
      %35 = arith.sitofp %34 : vector<128x128xi32> to vector<128x128xf32>
      %36 = arith.extui %23 : i1 to i32
      %37 = arith.sitofp %36 : i32 to f32
      %38 = vector.broadcast %37 : f32 to vector<128x128xf32>
      %39 = arith.mulf %35, %38 : vector<128x128xf32>
      %40 = vector.broadcast %6 : f32 to vector<128x128xf32>
      %41 = arith.mulf %40, %39 : vector<128x128xf32>
      %42 = arith.addf %22, %41 : vector<128x128xf32>
      %c128_i32_6 = arith.constant 128 : i32
      %43 = arith.muli %1, %c128_i32_6 : i32
      %c8_i32 = arith.constant 8 : i32
      %44 = arith.subi %c8_i32, %43 : i32
      %45 = vector.broadcast %44 : i32 to vector<128x128xi32>
      %46 = arith.cmpi slt, %31, %45 : vector<128x128xi32>
      %c128_i32_7 = arith.constant 128 : i32
      %47 = arith.muli %3, %c128_i32_7 : i32
      %c8_i32_8 = arith.constant 8 : i32
      %48 = arith.subi %c8_i32_8, %47 : i32
      %49 = vector.broadcast %48 : i32 to vector<128x128xi32>
      %50 = arith.cmpi slt, %32, %49 : vector<128x128xi32>
      %51 = arith.andi %46, %50 : vector<128x128xi1>
      %52 = arith.select %51, %42, %39 : vector<128x128xi1>, vector<128x128xf32>
      %c0_9 = arith.constant 0 : index
      %c0_10 = arith.constant 0 : index
      %53 = vector.load %arg6[%c0_9, %c0_10] : memref<128x128xf32, #tpu.memory_space<vmem>>, vector<128x128xf32>
      tpu.vector_store %arg6[%c0_9, %c0_10], %52 {strides = array<i32>} : memref<128x128xf32, #tpu.memory_space<vmem>>, vector<128x128xf32>,
    } else {
    }
    return
  }
  func.func @transform_0(%arg0: i32, %arg1: memref<1xi32, #tpu.memory_space<smem>>, %arg2: memref<1xi32, #tpu.memory_space<smem>>) -> (i32, i32) {
    %c0_i32 = arith.constant 0 : i32
    %c0_i32_0 = arith.constant 0 : i32
    %c0_i32_1 = arith.constant 0 : i32
    return %c0_i32, %c0_i32_0 : i32, i32
  }
  func.func @transform_1(%arg0: i32, %arg1: memref<1xi32, #tpu.memory_space<smem>>, %arg2: memref<1xi32, #tpu.memory_space<smem>>) -> (i32, i32) {
    %c0_i32 = arith.constant 0 : i32
    %c0_i32_0 = arith.constant 0 : i32
    %c0_i32_1 = arith.constant 0 : i32
    return %c0_i32, %c0_i32_0 : i32, i32
  }
  func.func @transform_2(%arg0: i32, %arg1: memref<1xi32, #tpu.memory_space<smem>>, %arg2: memref<1xi32, #tpu.memory_space<smem>>) -> i32 {
    %c0_i32 = arith.constant 0 : i32
    %c0_i32_0 = arith.constant 0 : i32
    return %c0_i32 : i32
  }
  func.func @transform_3(%arg0: i32, %arg1: memref<1xi32, #tpu.memory_space<smem>>, %arg2: memref<1xi32, #tpu.memory_space<smem>>) -> (i32, i32) {
    %0 = arith.index_cast %arg0 : i32 to index
    %1 = memref.load %arg1[%0] : memref<1xi32, #tpu.memory_space<smem>>
    %2 = arith.index_cast %arg0 : i32 to index
    %3 = memref.load %arg2[%2] : memref<1xi32, #tpu.memory_space<smem>>
    %c0_i32 = arith.constant 0 : i32
    return %1, %3 : i32, i32
  }
}

</mosaic_0001>

<llo_original>
// kernel: tpu_custom_call.1
$region0: #{tpu_custom_call.1}
  #allocation0 [shape = 'u32[]', space=smem, size = 0x4, offset = 0x4, fixed_abs, tag = 'smem constant byte address 0x4 - core index']
  #allocation1 [shape = 'u32[144,128]{1,0:T(1,128)}', space=vmem, size = 0x12000, scoped, tag = 'internal scratch']
  #allocation2 [shape = 's32[1]{0}', space=sflag, size = 0x4, scoped, tag = 'scoped memory for tpu_custom_call.1']
  #allocation3 [shape = 's32[1]{0:T(128)S(6)}', space=smem, size = 0x200, scoped, tag = 'prefetched SMEM operand 0']
  #allocation4 [shape = 's32[1]{0:T(128)S(6)}', space=smem, size = 0x200, scoped, tag = 'prefetched SMEM operand 1']
  %s0 = inlined_call_operand.<no memory space> [shape: s32[1], index: 0, kind: input, shape index: {}]
  %s1 = inlined_call_operand.<no memory space> [shape: s32[1], index: 1, kind: input, shape index: {}]
  %s2 = inlined_call_operand.hbm [shape: f32[128,128], index: 2, kind: input, shape index: {}]
  %s3 = inlined_call_operand.hbm [shape: f32[128,128], index: 3, kind: input, shape index: {}]
  %s4 = inlined_call_operand.vmem [shape: f32[3], index: 4, kind: input, shape index: {}]
  %s5 = inlined_call_operand.hbm [shape: f32[128,128], index: 5, kind: output, shape index: {}]
  %s6 = sld [smem:[#allocation0]]
  $region42: #{tpu_custom_call.1} parent=0
    _
  %s8 = ssub.s32 1, %s6
  %s9 = scalar_select 0, %s8, %s6
  %10 = sst [smem:[#allocation3]] %s0
  %11 = sst [smem:[#allocation4]] %s1
  $region1: #{tpu_custom_call.1} parent=0
    #allocation5 [shape = 'u8[65536]{0}', space=vmem, size = 0x10000, scoped, tag = 'input window, operand 2, single buffered']
    #allocation6 [shape = 's32[1]{0}', space=sflag, size = 0x4, scoped, tag = 'scoped memory for tpu_custom_call.1']
    #allocation7 [shape = 's32[1]{0}', space=sflag, size = 0x4, scoped, tag = 'scoped memory for tpu_custom_call.1']
    #allocation8 [shape = 's32[1]{0}', space=sflag, size = 0x4, scoped, tag = 'scoped memory for tpu_custom_call.1']
    #allocation9 [shape = 'u8[65536]{0}', space=vmem, size = 0x10000, scoped, tag = 'input window, operand 3, single buffered']
    #allocation10 [shape = 's32[1]{0}', space=sflag, size = 0x4, scoped, tag = 'scoped memory for tpu_custom_call.1']
    #allocation11 [shape = 'u8[512]{0}', space=smem, size = 0x200, scoped, tag = 'input window, operand 4, single buffered']
    #allocation12 [shape = 'u8[65536]{0}', space=vmem, size = 0x10000, scoped, tag = 'output window, operand 0, single buffered']
    %12 = vsyncpa [#allocation6], 0
    %13 = vsyncpa [#allocation10], 0
    %14 = vsyncpa [#allocation8], 0
    %15 = vsyncpa [#allocation7], 0
    // Predicated region
    $region2: #{tpu_custom_call.1} parent=1 // pred_check
      _
    $region3: #{tpu_custom_call.1} parent=1 // pred_check_branch
      %17 = sbr.rel (0) target = $region5
    $region4: #{tpu_custom_call.1} parent=1 // pred_region
      %s19 = ssub.s32 2048, 2048
      %20 = vsyncadd [#allocation6], %s19
      %s21 = sshll.u32 [#allocation5], 4
      %s22 = int_to_ptr.vmem [resolvable:$true] %s21
      %27 = dma.hbm_to_vmem [thread:$0]  %s2, 2048, %s22, [#allocation6], 128, 128, 8
    $region5: #{tpu_custom_call.1} parent=1 // pred_fallthru
      _
    // Predicated region
    $region6: #{tpu_custom_call.1} parent=1 // pred_check
      _
    $region7: #{tpu_custom_call.1} parent=1 // pred_check_branch
      %29 = sbr.rel (0) target = $region9
    $region8: #{tpu_custom_call.1} parent=1 // pred_region
      %s31 = ssub.s32 2048, 2048
      %32 = vsyncadd [#allocation10], %s31
      %s33 = sshll.u32 [#allocation9], 4
      %s34 = int_to_ptr.vmem [resolvable:$true] %s33
      %39 = dma.hbm_to_vmem [thread:$0]  %s3, 2048, %s34, [#allocation10], 128, 128, 8
    $region9: #{tpu_custom_call.1} parent=1 // pred_fallthru
      _
    // Predicated region
    $region10: #{tpu_custom_call.1} parent=1 // pred_check
      _
    $region11: #{tpu_custom_call.1} parent=1 // pred_check_branch
      %41 = sbr.rel (0) target = $region13
    $region12: #{tpu_custom_call.1} parent=1 // pred_region
      %s43 = ssub.s32 16, 16
      %44 = vsyncadd [#allocation8], %s43
      %s46 = sshll.u32 %s4, 4
      %s47 = int_to_ptr.vmem [resolvable:$true] %s46
      %49 = dma.vmem_to_smem %s47, 16, [#allocation11], [#allocation8]
    $region13: #{tpu_custom_call.1} parent=1 // pred_fallthru
      _
    // Predicated region
    $region14: #{tpu_custom_call.1} parent=1 // pred_check
      _
    $region15: #{tpu_custom_call.1} parent=1 // pred_check_branch
      %51 = sbr.rel (0) target = $region17
    $region16: #{tpu_custom_call.1} parent=1 // pred_region
      %52 = dma.done [#allocation6], 2048
    $region17: #{tpu_custom_call.1} parent=1 // pred_fallthru
      _
    // Predicated region
    $region18: #{tpu_custom_call.1} parent=1 // pred_check
      _
    $region19: #{tpu_custom_call.1} parent=1 // pred_check_branch
      %54 = sbr.rel (0) target = $region21
    $region20: #{tpu_custom_call.1} parent=1 // pred_region
      %55 = dma.done [#allocation10], 2048
    $region21: #{tpu_custom_call.1} parent=1 // pred_fallthru
      _
    // Predicated region
    $region22: #{tpu_custom_call.1} parent=1 // pred_check
      _
    $region23: #{tpu_custom_call.1} parent=1 // pred_check_branch
      %57 = sbr.rel (0) target = $region25
    $region24: #{tpu_custom_call.1} parent=1 // pred_region
      %58 = dma.done [#allocation8], 16
    $region25: #{tpu_custom_call.1} parent=1 // pred_fallthru
      _
    %59 = sfence
    %s60 = sld [smem:[#allocation3]]
    %s61 = sld [smem:[#allocation4]]
    %s62 = smul.u32 16, %s60
    %s63 = sld [smem:[#allocation3]]
    %s64 = sld [smem:[#allocation4]]
    %s65 = sld [smem:[#allocation11]]
    %s66 = sld [smem:[#allocation11 + $0x1]]
    %s67 = sld [smem:[#allocation11 + $0x2]]
    %s68 = smul.u32 %s63, 128
    %s69 = smul.u32 %s64, 128
    %s70 = scalar_lea.vmem [#allocation5], %s68
    %v71 = vld [vmem:[%s70] sm:$0xff]
    %v72 = vld [vmem:[%s70 + $0x8] sm:$0xff]
    %v73 = vld [vmem:[%s70 + $0x10] sm:$0xff]
    %v74 = vld [vmem:[%s70 + $0x18] sm:$0xff]
    %v75 = vld [vmem:[%s70 + $0x20] sm:$0xff]
    %v76 = vld [vmem:[%s70 + $0x28] sm:$0xff]
    %v77 = vld [vmem:[%s70 + $0x30] sm:$0xff]
    %v78 = vld [vmem:[%s70 + $0x38] sm:$0xff]
    %v79 = vld [vmem:[%s70 + $0x40] sm:$0xff]
    %v80 = vld [vmem:[%s70 + $0x48] sm:$0xff]
    %v81 = vld [vmem:[%s70 + $0x50] sm:$0xff]
    %v82 = vld [vmem:[%s70 + $0x58] sm:$0xff]
    %v83 = vld [vmem:[%s70 + $0x60] sm:$0xff]
    %v84 = vld [vmem:[%s70 + $0x68] sm:$0xff]
    %v85 = vld [vmem:[%s70 + $0x70] sm:$0xff]
    %v86 = vld [vmem:[%s70 + $0x78] sm:$0xff]
    %s87 = scalar_lea.vmem [#allocation9], %s69
    %v88 = vld [vmem:[%s87] sm:$0xff]
    %v89 = vld [vmem:[%s87 + $0x8] sm:$0xff]
    %v90 = vld [vmem:[%s87 + $0x10] sm:$0xff]
    %v91 = vld [vmem:[%s87 + $0x18] sm:$0xff]
    %v92 = vld [vmem:[%s87 + $0x20] sm:$0xff]
    %v93 = vld [vmem:[%s87 + $0x28] sm:$0xff]
    %v94 = vld [vmem:[%s87 + $0x30] sm:$0xff]
    %v95 = vld [vmem:[%s87 + $0x38] sm:$0xff]
    %v96 = vld [vmem:[%s87 + $0x40] sm:$0xff]
    %v97 = vld [vmem:[%s87 + $0x48] sm:$0xff]
    %v98 = vld [vmem:[%s87 + $0x50] sm:$0xff]
    %v99 = vld [vmem:[%s87 + $0x58] sm:$0xff]
    %v100 = vld [vmem:[%s87 + $0x60] sm:$0xff]
    %v101 = vld [vmem:[%s87 + $0x68] sm:$0xff]
    %v102 = vld [vmem:[%s87 + $0x70] sm:$0xff]
    %v103 = vld [vmem:[%s87 + $0x78] sm:$0xff]
    %104 = vmatprep.subr.mxu0 0.0
    %105 = vmatpush1.xpose.msra.mxu0 %v103
    %106 = vmatprep.subr.mxu0 0.0
    %107 = vmatpush1.xpose.msra.mxu0 %v102
    %108 = vmatprep.subr.mxu0 0.0
    %109 = vmatpush1.xpose.msra.mxu0 %v101
    %110 = vmatprep.subr.mxu0 0.0
    %111 = vmatpush1.xpose.msra.mxu0 %v100
    %112 = vmatprep.subr.mxu0 0.0
    %113 = vmatpush1.xpose.msra.mxu0 %v99
    %114 = vmatprep.subr.mxu0 0.0
    %115 = vmatpush1.xpose.msra.mxu0 %v98
    %116 = vmatprep.subr.mxu0 0.0
    %117 = vmatpush1.xpose.msra.mxu0 %v97
    %118 = vmatprep.subr.mxu0 0.0
    %119 = vmatpush1.xpose.msra.mxu0 %v96
    %120 = vmatprep.subr.mxu0 0.0
    %121 = vmatpush1.xpose.msra.mxu0 %v95
    %122 = vmatprep.subr.mxu0 0.0
    %123 = vmatpush1.xpose.msra.mxu0 %v94
    %124 = vmatprep.subr.mxu0 0.0
    %125 = vmatpush1.xpose.msra.mxu0 %v93
    %126 = vmatprep.subr.mxu0 0.0
    %127 = vmatpush1.xpose.msra.mxu0 %v92
    %128 = vmatprep.subr.mxu0 0.0
    %129 = vmatpush1.xpose.msra.mxu0 %v91
    %130 = vmatprep.subr.mxu0 0.0
    %131 = vmatpush1.xpose.msra.mxu0 %v90
    %132 = vmatprep.subr.mxu0 0.0
    %133 = vmatpush1.xpose.msra.mxu0 %v89
    %134 = vmatprep.subr.mxu0 0.0
    %135 = vmatpush1.xpose.msra.mxu0 %v88
    %136 = vmatprep.subr.mxu0 0.0
    %137 = vmatpush2.xpose.msra.mxu0 0.0
    %138 = vmatprep.subr.mxu0 0.0
    %139 = vmatpush2.xpose.msra.mxu0 0.0
    %140 = vmatprep.subr.mxu0 0.0
    %141 = vmatpush2.xpose.msra.mxu0 0.0
    %142 = vmatprep.subr.mxu0 0.0
    %143 = vmatpush2.xpose.msra.mxu0 0.0
    %144 = vmatprep.subr.mxu0 0.0
    %145 = vmatpush2.xpose.msra.mxu0 0.0
    %146 = vmatprep.subr.mxu0 0.0
    %147 = vmatpush2.xpose.msra.mxu0 0.0
    %148 = vmatprep.subr.mxu0 0.0
    %149 = vmatpush2.xpose.msra.mxu0 0.0
    %150 = vmatprep.subr.mxu0 0.0
    %151 = vmatpush2.xpose.msra.mxu0 0.0
    %152 = vmatprep.subr.mxu0 0.0
    %153 = vmatpush2.xpose.msra.mxu0 0.0
    %154 = vmatprep.subr.mxu0 0.0
    %155 = vmatpush2.xpose.msra.mxu0 0.0
    %156 = vmatprep.subr.mxu0 0.0
    %157 = vmatpush2.xpose.msra.mxu0 0.0
    %158 = vmatprep.subr.mxu0 0.0
    %159 = vmatpush2.xpose.msra.mxu0 0.0
    %160 = vmatprep.subr.mxu0 0.0
    %161 = vmatpush2.xpose.msra.mxu0 0.0
    %162 = vmatprep.subr.mxu0 0.0
    %163 = vmatpush2.xpose.msra.mxu0 0.0
    %164 = vmatprep.subr.mxu0 0.0
    %165 = vmatpush2.xpose.msra.mxu0 0.0
    %166 = vmatprep.subr.mxu0 0.0
    %167 = vmatpush2.xpose.msra.mxu0 0.0
    %168 = vmatprep.mubr.f32.mxu0 0.0
    %169 = vmatmul.mubr.f32.gmra.mxu0 %v71
    %v170 = vpop.f32.mrf.mxu0
    %v171 = vadd.f32 0.0, %v170
    %v172 = vpop.f32.mrf.mxu0
    %173 = vmatprep.mubr.f32.mxu0 0.0
    %174 = vmatmul.mubr.f32.gmra.mxu0 %v72
    %v175 = vpop.f32.mrf.mxu0
    %v176 = vadd.f32 0.0, %v175
    %v177 = vpop.f32.mrf.mxu0
    %178 = vmatprep.mubr.f32.mxu0 0.0
    %179 = vmatmul.mubr.f32.gmra.mxu0 %v73
    %v180 = vpop.f32.mrf.mxu0
    %v181 = vadd.f32 0.0, %v180
    %v182 = vpop.f32.mrf.mxu0
    %183 = vmatprep.mubr.f32.mxu0 0.0
    %184 = vmatmul.mubr.f32.gmra.mxu0 %v74
    %v185 = vpop.f32.mrf.mxu0
    %v186 = vadd.f32 0.0, %v185
    %v187 = vpop.f32.mrf.mxu0
    %188 = vmatprep.mubr.f32.mxu0 0.0
    %189 = vmatmul.mubr.f32.gmra.mxu0 %v75
    %v190 = vpop.f32.mrf.mxu0
    %v191 = vadd.f32 0.0, %v190
    %v192 = vpop.f32.mrf.mxu0
    %193 = vmatprep.mubr.f32.mxu0 0.0
    %194 = vmatmul.mubr.f32.gmra.mxu0 %v76
    %v195 = vpop.f32.mrf.mxu0
    %v196 = vadd.f32 0.0, %v195
    %v197 = vpop.f32.mrf.mxu0
    %198 = vmatprep.mubr.f32.mxu0 0.0
    %199 = vmatmul.mubr.f32.gmra.mxu0 %v77
    %v200 = vpop.f32.mrf.mxu0
    %v201 = vadd.f32 0.0, %v200
    %v202 = vpop.f32.mrf.mxu0
    %203 = vmatprep.mubr.f32.mxu0 0.0
    %204 = vmatmul.mubr.f32.gmra.mxu0 %v78
    %v205 = vpop.f32.mrf.mxu0
    %v206 = vadd.f32 0.0, %v205
    %v207 = vpop.f32.mrf.mxu0
    %208 = vmatprep.mubr.f32.mxu0 0.0
    %209 = vmatmul.mubr.f32.gmra.mxu0 %v79
    %v210 = vpop.f32.mrf.mxu0
    %v211 = vadd.f32 0.0, %v210
    %v212 = vpop.f32.mrf.mxu0
    %213 = vmatprep.mubr.f32.mxu0 0.0
    %214 = vmatmul.mubr.f32.gmra.mxu0 %v80
    %v215 = vpop.f32.mrf.mxu0
    %v216 = vadd.f32 0.0, %v215
    %v217 = vpop.f32.mrf.mxu0
    %218 = vmatprep.mubr.f32.mxu0 0.0
    %219 = vmatmul.mubr.f32.gmra.mxu0 %v81
    %v220 = vpop.f32.mrf.mxu0
    %v221 = vadd.f32 0.0, %v220
    %v222 = vpop.f32.mrf.mxu0
    %223 = vmatprep.mubr.f32.mxu0 0.0
    %224 = vmatmul.mubr.f32.gmra.mxu0 %v82
    %v225 = vpop.f32.mrf.mxu0
    %v226 = vadd.f32 0.0, %v225
    %v227 = vpop.f32.mrf.mxu0
    %228 = vmatprep.mubr.f32.mxu0 0.0
    %229 = vmatmul.mubr.f32.gmra.mxu0 %v83
    %v230 = vpop.f32.mrf.mxu0
    %v231 = vadd.f32 0.0, %v230
    %v232 = vpop.f32.mrf.mxu0
    %233 = vmatprep.mubr.f32.mxu0 0.0
    %234 = vmatmul.mubr.f32.gmra.mxu0 %v84
    %v235 = vpop.f32.mrf.mxu0
    %v236 = vadd.f32 0.0, %v235
    %v237 = vpop.f32.mrf.mxu0
    %238 = vmatprep.mubr.f32.mxu0 0.0
    %239 = vmatmul.mubr.f32.gmra.mxu0 %v85
    %v240 = vpop.f32.mrf.mxu0
    %v241 = vadd.f32 0.0, %v240
    %v242 = vpop.f32.mrf.mxu0
    %243 = vmatprep.mubr.f32.mxu0 0.0
    %244 = vmatmul.mubr.f32.gmra.mxu0 %v86
    %v245 = vpop.f32.mrf.mxu0
    %v246 = vadd.f32 0.0, %v245
    %v247 = vpop.f32.mrf.mxu0
    %248 = vdwg.mxu0
    %v249 = vmax.f32 %v171, 0.0
    %v250 = vmax.f32 %v176, 0.0
    %v251 = vmax.f32 %v181, 0.0
    %v252 = vmax.f32 %v186, 0.0
    %v253 = vmax.f32 %v191, 0.0
    %v254 = vmax.f32 %v196, 0.0
    %v255 = vmax.f32 %v201, 0.0
    %v256 = vmax.f32 %v206, 0.0
    %v257 = vmax.f32 %v211, 0.0
    %v258 = vmax.f32 %v216, 0.0
    %v259 = vmax.f32 %v221, 0.0
    %v260 = vmax.f32 %v226, 0.0
    %v261 = vmax.f32 %v231, 0.0
    %v262 = vmax.f32 %v236, 0.0
    %v263 = vmax.f32 %v241, 0.0
    %v264 = vmax.f32 %v246, 0.0
    %v265 = vstv %s66
    %v266 = vmul.f32 %v249, %v265
    %v267 = vmul.f32 %v250, %v265
    %v268 = vmul.f32 %v251, %v265
    %v269 = vmul.f32 %v252, %v265
    %v270 = vmul.f32 %v253, %v265
    %v271 = vmul.f32 %v254, %v265
    %v272 = vmul.f32 %v255, %v265
    %v273 = vmul.f32 %v256, %v265
    %v274 = vmul.f32 %v257, %v265
    %v275 = vmul.f32 %v258, %v265
    %v276 = vmul.f32 %v259, %v265
    %v277 = vmul.f32 %v260, %v265
    %v278 = vmul.f32 %v261, %v265
    %v279 = vmul.f32 %v262, %v265
    %v280 = vmul.f32 %v263, %v265
    %v281 = vmul.f32 %v264, %v265
    %v282 = vmul.f32 %v266, 1.442695
    %v283 = vpow.pop %v282
    %v284 = vmul.f32 %v267, 1.442695
    %v285 = vpow.pop %v284
    %v286 = vmul.f32 %v268, 1.442695
    %v287 = vpow.pop %v286
    %v288 = vmul.f32 %v269, 1.442695
    %v289 = vpow.pop %v288
    %v290 = vmul.f32 %v270, 1.442695
    %v291 = vpow.pop %v290
    %v292 = vmul.f32 %v271, 1.442695
    %v293 = vpow.pop %v292
    %v294 = vmul.f32 %v272, 1.442695
    %v295 = vpow.pop %v294
    %v296 = vmul.f32 %v273, 1.442695
    %v297 = vpow.pop %v296
    %v298 = vmul.f32 %v274, 1.442695
    %v299 = vpow.pop %v298
    %v300 = vmul.f32 %v275, 1.442695
    %v301 = vpow.pop %v300
    %v302 = vmul.f32 %v276, 1.442695
    %v303 = vpow.pop %v302
    %v304 = vmul.f32 %v277, 1.442695
    %v305 = vpow.pop %v304
    %v306 = vmul.f32 %v278, 1.442695
    %v307 = vpow.pop %v306
    %v308 = vmul.f32 %v279, 1.442695
    %v309 = vpow.pop %v308
    %v310 = vmul.f32 %v280, 1.442695
    %v311 = vpow.pop %v310
    %v312 = vmul.f32 %v281, 1.442695
    %v313 = vpow.pop %v312
    %v314 = vstv %s65
    %v315 = vmul.f32 %v314, %v283
    %v316 = vmul.f32 %v314, %v285
    %v317 = vmul.f32 %v314, %v287
    %v318 = vmul.f32 %v314, %v289
    %v319 = vmul.f32 %v314, %v291
    %v320 = vmul.f32 %v314, %v293
    %v321 = vmul.f32 %v314, %v295
    %v322 = vmul.f32 %v314, %v297
    %v323 = vmul.f32 %v314, %v299
    %v324 = vmul.f32 %v314, %v301
    %v325 = vmul.f32 %v314, %v303
    %v326 = vmul.f32 %v314, %v305
    %v327 = vmul.f32 %v314, %v307
    %v328 = vmul.f32 %v314, %v309
    %v329 = vmul.f32 %v314, %v311
    %v330 = vmul.f32 %v314, %v313
    %p331 = scmp.eq.s32.totalorder %s63, %s64
    %p332 = scmp.eq.s32.totalorder %s63, 0
    %p333 = por %p331, %p332
    // Predicated region
    $region26: #{tpu_custom_call.1} parent=1 // pred_check
      %p334 = pneg %p333
    $region27: #{tpu_custom_call.1} parent=1 // pred_check_branch
      %336 = sbr.rel (%p334) target = $region29
    $region28: #{tpu_custom_call.1} parent=1 // pred_region
      %v337 = vlaneseq
      %v338 = vshrl.u32 %v337, 7
      %v339 = vadd.s32 %v338, 8
      %v340 = vadd.s32 %v338, 16
      %v341 = vadd.s32 %v338, 24
      %v342 = vadd.s32 %v338, 32
      %v343 = vadd.s32 %v338, 40
      %v344 = vadd.s32 %v338, 48
      %v345 = vadd.s32 %v338, 56
      %v346 = vadd.s32 %v338, 64
      %v347 = vadd.s32 %v338, 72
      %v348 = vadd.s32 %v338, 80
      %v349 = vadd.s32 %v338, 88
      %v350 = vadd.s32 %v338, 96
      %v351 = vadd.s32 %v338, 104
      %v352 = vadd.s32 %v338, 112
      %v353 = vadd.s32 %v338, 120
      %v354 = vlaneseq
      %v355 = vand.u32 %v354, 127
      %vm356 = vcmp.eq.s32.totalorder %v338, %v355
      %vm357 = vcmp.eq.s32.totalorder %v339, %v355
      %vm358 = vcmp.eq.s32.totalorder %v340, %v355
      %vm359 = vcmp.eq.s32.totalorder %v341, %v355
      %vm360 = vcmp.eq.s32.totalorder %v342, %v355
      %vm361 = vcmp.eq.s32.totalorder %v343, %v355
      %vm362 = vcmp.eq.s32.totalorder %v344, %v355
      %vm363 = vcmp.eq.s32.totalorder %v345, %v355
      %vm364 = vcmp.eq.s32.totalorder %v346, %v355
      %vm365 = vcmp.eq.s32.totalorder %v347, %v355
      %vm366 = vcmp.eq.s32.totalorder %v348, %v355
      %vm367 = vcmp.eq.s32.totalorder %v349, %v355
      %vm368 = vcmp.eq.s32.totalorder %v350, %v355
      %vm369 = vcmp.eq.s32.totalorder %v351, %v355
      %vm370 = vcmp.eq.s32.totalorder %v352, %v355
      %vm371 = vcmp.eq.s32.totalorder %v353, %v355
      %v372 = vsel %vm356, 1, 0
      %v373 = vsel %vm357, 1, 0
      %v374 = vsel %vm358, 1, 0
      %v375 = vsel %vm359, 1, 0
      %v376 = vsel %vm360, 1, 0
      %v377 = vsel %vm361, 1, 0
      %v378 = vsel %vm362, 1, 0
      %v379 = vsel %vm363, 1, 0
      %v380 = vsel %vm364, 1, 0
      %v381 = vsel %vm365, 1, 0
      %v382 = vsel %vm366, 1, 0
      %v383 = vsel %vm367, 1, 0
      %v384 = vsel %vm368, 1, 0
      %v385 = vsel %vm369, 1, 0
      %v386 = vsel %vm370, 1, 0
      %v387 = vsel %vm371, 1, 0
      %v388 = vcvt.s32.f32 %v372
      %v389 = vcvt.s32.f32 %v373
      %v390 = vcvt.s32.f32 %v374
      %v391 = vcvt.s32.f32 %v375
      %v392 = vcvt.s32.f32 %v376
      %v393 = vcvt.s32.f32 %v377
      %v394 = vcvt.s32.f32 %v378
      %v395 = vcvt.s32.f32 %v379
      %v396 = vcvt.s32.f32 %v380
      %v397 = vcvt.s32.f32 %v381
      %v398 = vcvt.s32.f32 %v382
      %v399 = vcvt.s32.f32 %v383
      %v400 = vcvt.s32.f32 %v384
      %v401 = vcvt.s32.f32 %v385
      %v402 = vcvt.s32.f32 %v386
      %v403 = vcvt.s32.f32 %v387
      %s404 = scalar_select %p331, 1, 0
      %s405 = scvt.s32.f32 %s404
      %v406 = vstv %s405
      %v407 = vmul.f32 %v388, %v406
      %v408 = vmul.f32 %v389, %v406
      %v409 = vmul.f32 %v390, %v406
      %v410 = vmul.f32 %v391, %v406
      %v411 = vmul.f32 %v392, %v406
      %v412 = vmul.f32 %v393, %v406
      %v413 = vmul.f32 %v394, %v406
      %v414 = vmul.f32 %v395, %v406
      %v415 = vmul.f32 %v396, %v406
      %v416 = vmul.f32 %v397, %v406
      %v417 = vmul.f32 %v398, %v406
      %v418 = vmul.f32 %v399, %v406
      %v419 = vmul.f32 %v400, %v406
      %v420 = vmul.f32 %v401, %v406
      %v421 = vmul.f32 %v402, %v406
      %v422 = vmul.f32 %v403, %v406
      %v423 = vstv %s67
      %v424 = vmul.f32 %v423, %v407
      %v425 = vmul.f32 %v423, %v408
      %v426 = vmul.f32 %v423, %v409
      %v427 = vmul.f32 %v423, %v410
      %v428 = vmul.f32 %v423, %v411
      %v429 = vmul.f32 %v423, %v412
      %v430 = vmul.f32 %v423, %v413
      %v431 = vmul.f32 %v423, %v414
      %v432 = vmul.f32 %v423, %v415
      %v433 = vmul.f32 %v423, %v416
      %v434 = vmul.f32 %v423, %v417
      %v435 = vmul.f32 %v423, %v418
      %v436 = vmul.f32 %v423, %v419
      %v437 = vmul.f32 %v423, %v420
      %v438 = vmul.f32 %v423, %v421
      %v439 = vmul.f32 %v423, %v422
      %v440 = vadd.f32 %v315, %v424
      %v441 = vadd.f32 %v316, %v425
      %v442 = vadd.f32 %v317, %v426
      %v443 = vadd.f32 %v318, %v427
      %v444 = vadd.f32 %v319, %v428
      %v445 = vadd.f32 %v320, %v429
      %v446 = vadd.f32 %v321, %v430
      %v447 = vadd.f32 %v322, %v431
      %v448 = vadd.f32 %v323, %v432
      %v449 = vadd.f32 %v324, %v433
      %v450 = vadd.f32 %v325, %v434
      %v451 = vadd.f32 %v326, %v435
      %v452 = vadd.f32 %v327, %v436
      %v453 = vadd.f32 %v328, %v437
      %v454 = vadd.f32 %v329, %v438
      %v455 = vadd.f32 %v330, %v439
      %s456 = ssub.s32 8, %s68
      %v457 = vstv %s456
      %vm458 = vcmp.lt.s32.totalorder %v338, %v457
      %vm459 = vcmp.lt.s32.totalorder %v339, %v457
      %vm460 = vcmp.lt.s32.totalorder %v340, %v457
      %vm461 = vcmp.lt.s32.totalorder %v341, %v457
      %vm462 = vcmp.lt.s32.totalorder %v342, %v457
      %vm463 = vcmp.lt.s32.totalorder %v343, %v457
      %vm464 = vcmp.lt.s32.totalorder %v344, %v457
      %vm465 = vcmp.lt.s32.totalorder %v345, %v457
      %vm466 = vcmp.lt.s32.totalorder %v346, %v457
      %vm467 = vcmp.lt.s32.totalorder %v347, %v457
      %vm468 = vcmp.lt.s32.totalorder %v348, %v457
      %vm469 = vcmp.lt.s32.totalorder %v349, %v457
      %vm470 = vcmp.lt.s32.totalorder %v350, %v457
      %vm471 = vcmp.lt.s32.totalorder %v351, %v457
      %vm472 = vcmp.lt.s32.totalorder %v352, %v457
      %vm473 = vcmp.lt.s32.totalorder %v353, %v457
      %s474 = ssub.s32 8, %s69
      %v475 = vstv %s474
      %vm476 = vcmp.lt.s32.totalorder %v355, %v475
      %vm477 = vmand %vm458, %vm476
      %vm478 = vmand %vm459, %vm476
      %vm479 = vmand %vm460, %vm476
      %vm480 = vmand %vm461, %vm476
      %vm481 = vmand %vm462, %vm476
      %vm482 = vmand %vm463, %vm476
      %vm483 = vmand %vm464, %vm476
      %vm484 = vmand %vm465, %vm476
      %vm485 = vmand %vm466, %vm476
      %vm486 = vmand %vm467, %vm476
      %vm487 = vmand %vm468, %vm476
      %vm488 = vmand %vm469, %vm476
      %vm489 = vmand %vm470, %vm476
      %vm490 = vmand %vm471, %vm476
      %vm491 = vmand %vm472, %vm476
      %vm492 = vmand %vm473, %vm476
      %v493 = vsel %vm477, %v440, %v407
      %v494 = vsel %vm478, %v441, %v408
      %v495 = vsel %vm479, %v442, %v409
      %v496 = vsel %vm480, %v443, %v410
      %v497 = vsel %vm481, %v444, %v411
      %v498 = vsel %vm482, %v445, %v412
      %v499 = vsel %vm483, %v446, %v413
      %v500 = vsel %vm484, %v447, %v414
      %v501 = vsel %vm485, %v448, %v415
      %v502 = vsel %vm486, %v449, %v416
      %v503 = vsel %vm487, %v450, %v417
      %v504 = vsel %vm488, %v451, %v418
      %v505 = vsel %vm489, %v452, %v419
      %v506 = vsel %vm490, %v453, %v420
      %v507 = vsel %vm491, %v454, %v421
      %v508 = vsel %vm492, %v455, %v422
      %509 = vst [vmem:[#allocation12] sm:$0xff] %v493
      %510 = vst [vmem:[#allocation12 + $0x8] sm:$0xff] %v494
      %511 = vst [vmem:[#allocation12 + $0x10] sm:$0xff] %v495
      %512 = vst [vmem:[#allocation12 + $0x18] sm:$0xff] %v496
      %513 = vst [vmem:[#allocation12 + $0x20] sm:$0xff] %v497
      %514 = vst [vmem:[#allocation12 + $0x28] sm:$0xff] %v498
      %515 = vst [vmem:[#allocation12 + $0x30] sm:$0xff] %v499
      %516 = vst [vmem:[#allocation12 + $0x38] sm:$0xff] %v500
      %517 = vst [vmem:[#allocation12 + $0x40] sm:$0xff] %v501
      %518 = vst [vmem:[#allocation12 + $0x48] sm:$0xff] %v502
      %519 = vst [vmem:[#allocation12 + $0x50] sm:$0xff] %v503
      %520 = vst [vmem:[#allocation12 + $0x58] sm:$0xff] %v504
      %521 = vst [vmem:[#allocation12 + $0x60] sm:$0xff] %v505
      %522 = vst [vmem:[#allocation12 + $0x68] sm:$0xff] %v506
      %523 = vst [vmem:[#allocation12 + $0x70] sm:$0xff] %v507
      %524 = vst [vmem:[#allocation12 + $0x78] sm:$0xff] %v508
    $region29: #{tpu_custom_call.1} parent=1 // pred_fallthru
      _
    %p525 = pneg %p333
    // Predicated region
    $region30: #{tpu_custom_call.1} parent=1 // pred_check
      _
    $region31: #{tpu_custom_call.1} parent=1 // pred_check_branch
      %527 = sbr.rel (%p333) target = $region33
    $region32: #{tpu_custom_call.1} parent=1 // pred_region
      %528 = vst [vmem:[#allocation12] sm:$0xff] %v315
      %529 = vst [vmem:[#allocation12 + $0x8] sm:$0xff] %v316
      %530 = vst [vmem:[#allocation12 + $0x10] sm:$0xff] %v317
      %531 = vst [vmem:[#allocation12 + $0x18] sm:$0xff] %v318
      %532 = vst [vmem:[#allocation12 + $0x20] sm:$0xff] %v319
      %533 = vst [vmem:[#allocation12 + $0x28] sm:$0xff] %v320
      %534 = vst [vmem:[#allocation12 + $0x30] sm:$0xff] %v321
      %535 = vst [vmem:[#allocation12 + $0x38] sm:$0xff] %v322
      %536 = vst [vmem:[#allocation12 + $0x40] sm:$0xff] %v323
      %537 = vst [vmem:[#allocation12 + $0x48] sm:$0xff] %v324
      %538 = vst [vmem:[#allocation12 + $0x50] sm:$0xff] %v325
      %539 = vst [vmem:[#allocation12 + $0x58] sm:$0xff] %v326
      %540 = vst [vmem:[#allocation12 + $0x60] sm:$0xff] %v327
      %541 = vst [vmem:[#allocation12 + $0x68] sm:$0xff] %v328
      %542 = vst [vmem:[#allocation12 + $0x70] sm:$0xff] %v329
      %543 = vst [vmem:[#allocation12 + $0x78] sm:$0xff] %v330
    $region33: #{tpu_custom_call.1} parent=1 // pred_fallthru
      _
    // Predicated region
    $region34: #{tpu_custom_call.1} parent=1 // pred_check
      _
    $region35: #{tpu_custom_call.1} parent=1 // pred_check_branch
      %545 = sbr.rel (0) target = $region37
    $region36: #{tpu_custom_call.1} parent=1 // pred_region
      %s546 = sld [smem:[#allocation3]]
      %s547 = sld [smem:[#allocation4]]
      %s548 = smul.u32 16, %s546
      %s550 = ssub.s32 2048, 2048
      %551 = vsyncadd [#allocation7], %s550
      %s552 = sadd.s32 %s547, %s548
      %s553 = smul.addr %s552, 128
      %s554 = scalar_lea.hbm %s5, %s553
      %s555 = sshll.u32 [#allocation12], 4
      %s556 = int_to_ptr.vmem [resolvable:$true] %s555
      %561 = dma.vmem_to_hbm [thread:$0]  %s556, 2048, %s554, [#allocation7], 128, 128, 8
    $region37: #{tpu_custom_call.1} parent=1 // pred_fallthru
      _
    // Predicated region
    $region38: #{tpu_custom_call.1} parent=1 // pred_check
      _
    $region39: #{tpu_custom_call.1} parent=1 // pred_check_branch
      %563 = sbr.rel (0) target = $region41
    $region40: #{tpu_custom_call.1} parent=1 // pred_region
      %564 = dma.done [#allocation7], 2048
    $region41: #{tpu_custom_call.1} parent=1 // pred_fallthru
      _
    %565 = vsyncpa [#allocation6], 1
    %566 = vsyncpa [#allocation10], 1
    %567 = vsyncpa [#allocation7], 1
    %568 = vsyncpa [#allocation8], 1

</llo_original>
